<compile_context>
chip_gen: v7x
topology: tpu7x:2x2x1
jax: 0.10.0
libtpu: 0.0.40
codegen_flags: <defaults>
</compile_context>

<pallas_src>
import jax
import jax.numpy as jnp
from jax.experimental import pallas as pl
from jax.experimental.pallas import tpu as pltpu

# ---- problem sizes (small, CLS-token fusion) --------------------------------
B = 2           # batch
SEQ = 8         # sequence length (only token 0 is used)
D_IMG = 32      # image feature dim
D_TXT = 32      # text feature dim
HIDDEN = 32     # MFB output dim
R = 4           # MFB factor count  -> joint embedding dim = HIDDEN * R = 128
JOINT = HIDDEN * R          # 128 (lane-aligned)

MAX_TILE_B = 256            # batch rows per grid step once B is non-toy


def _mfb_kernel(img_ref, txt_ref, w1_ref, b1_ref, w2_ref, b2_ref, pool_ref, out_ref):
    """One grid step: in-kernel CLS selection, two bf16 MXU projections (f32 accum),
    Hadamard product, factor sum-pool as a 0/1 matmul, signed sqrt + rsqrt L2 norm."""
    # CLS-token selection in-kernel (no wrapper-side gather/concat XLA op).
    x = img_ref[:, 0, :].astype(jnp.bfloat16)            # (TILE_B, D_IMG)
    y = txt_ref[:, 0, :].astype(jnp.bfloat16)            # (TILE_B, D_TXT)

    # Two small MXU matmuls, bf16 operands, f32 accumulation; biases are f32 VPU adds.
    h1 = jnp.dot(x, w1_ref[...], preferred_element_type=jnp.float32) + b1_ref[...]
    h2 = jnp.dot(y, w2_ref[...], preferred_element_type=jnp.float32) + b2_ref[...]

    # Hadamard product of the two projections (f32, VPU).
    z = h1 * h2                                           # (TILE_B, JOINT)

    # Factor sum-pool == z.reshape(., HIDDEN, R).sum(-1), expressed as a matmul with a
    # 0/1 pooling matrix on the otherwise-idle MXU (avoids cross-lane XLU regrouping).
    z = jnp.dot(z, pool_ref[...], preferred_element_type=jnp.float32)   # (TILE_B, HIDDEN)

    # distribution_normalize: power norm (signed sqrt, 1 EUP sqrt) + L2 via rsqrt.
    s = jnp.sqrt(jnp.abs(z))
    z = jnp.where(z >= 0.0, s, -s)
    inv = jax.lax.rsqrt(jnp.sum(z * z, axis=-1, keepdims=True) + 1e-24)
    out_ref[...] = z * inv


def mfb_fusion(img_feature, text_feature, kparams):
    """img_feature: (B, SEQ, D_IMG), text_feature: (B, SEQ, D_TXT) -> ((B, HIDDEN), None)."""
    w1, b1, w2, b2, pool = kparams
    b, seq, d_img = img_feature.shape
    d_txt = text_feature.shape[2]

    # Batch tiling: one step at toy B; multiple "parallel" steps (megacore sharding on
    # v7x) once B grows.  Weight/pool blocks use constant index_maps so they stay
    # VMEM-resident and are DMA'd once.
    tile_b = b if b <= MAX_TILE_B else MAX_TILE_B
    grid = (pl.cdiv(b, tile_b),)

    out = pl.pallas_call(
        _mfb_kernel,
        out_shape=jax.ShapeDtypeStruct((b, HIDDEN), jnp.float32),
        grid=grid,
        in_specs=[
            pl.BlockSpec((tile_b, seq, d_img), lambda i: (i, 0, 0)),
            pl.BlockSpec((tile_b, seq, d_txt), lambda i: (i, 0, 0)),
            pl.BlockSpec((d_img, JOINT), lambda i: (0, 0)),
            pl.BlockSpec((1, JOINT), lambda i: (0, 0)),
            pl.BlockSpec((d_txt, JOINT), lambda i: (0, 0)),
            pl.BlockSpec((1, JOINT), lambda i: (0, 0)),
            pl.BlockSpec((JOINT, HIDDEN), lambda i: (0, 0)),
        ],
        out_specs=pl.BlockSpec((tile_b, HIDDEN), lambda i: (i, 0)),
        compiler_params=pltpu.CompilerParams(
            dimension_semantics=("parallel",)),
    )(img_feature, text_feature, w1, b1, w2, b2, pool)
    return out, None


def make_params():
    """Deterministic parameter init (same shapes nn.Linear would create), f32 master copy."""
    k1, k2, k3, k4 = jax.random.split(jax.random.PRNGKey(42), 4)
    s1 = D_IMG ** -0.5
    s2 = D_TXT ** -0.5
    w1 = jax.random.uniform(k1, (D_IMG, JOINT), jnp.float32, -s1, s1)
    b1 = jax.random.uniform(k2, (1, JOINT), jnp.float32, -s1, s1)
    w2 = jax.random.uniform(k3, (D_TXT, JOINT), jnp.float32, -s2, s2)
    b2 = jax.random.uniform(k4, (1, JOINT), jnp.float32, -s2, s2)
    return w1, b1, w2, b2


def prep_kernel_params(params):
    """Host-side, one-time weight prep:
       - projection weights cast to bf16 (MXU-native input; kernel accumulates in f32),
       - biases kept f32 (VPU adds),
       - 0/1 factor-pooling matrix kept f32 (exact, tiny)."""
    w1, b1, w2, b2 = params
    pool = jax.nn.one_hot(jnp.arange(JOINT) // R, HIDDEN, dtype=jnp.float32)  # (JOINT, HIDDEN)
    return (w1.astype(jnp.bfloat16), b1, w2.astype(jnp.bfloat16), b2, pool)


def _reference(img_feature, text_feature, kparams):
    """Plain-JAX reference mirroring the kernel numerics (bf16 matmul operands, f32 accum)."""
    w1, b1, w2, b2, _ = kparams
    bsz = img_feature.shape[0]
    x = img_feature[:, 0].astype(jnp.bfloat16)
    y = text_feature[:, 0].astype(jnp.bfloat16)
    h1 = jnp.dot(x, w1, preferred_element_type=jnp.float32) + b1
    h2 = jnp.dot(y, w2, preferred_element_type=jnp.float32) + b2
    z = (h1 * h2).reshape(bsz, HIDDEN, R).sum(-1)
    s = jnp.sqrt(jnp.abs(z))
    z = jnp.where(z >= 0.0, s, -s)
    return z / jnp.sqrt(jnp.sum(z * z, axis=-1, keepdims=True) + 1e-24)


if __name__ == "__main__":
    key = jax.random.PRNGKey(0)
    k_img, k_txt = jax.random.split(key)
    img_feature = jax.random.normal(k_img, (B, SEQ, D_IMG), jnp.float32)
    text_feature = jax.random.normal(k_txt, (B, SEQ, D_TXT), jnp.float32)

    kparams = prep_kernel_params(make_params())

    out, aux = mfb_fusion(img_feature, text_feature, kparams)
    out = jax.block_until_ready(out)

    ref = _reference(img_feature, text_feature, kparams)
    assert out.shape == (B, HIDDEN)
    assert aux is None
    assert bool(jnp.allclose(out, ref, atol=1e-4, rtol=1e-4))
    print("KERNEL_OK")
</pallas_src>

<mosaic_0001>
module attributes {stable_mosaic.version = 11 : i64} {
  func.func @_mfb_kernel(%arg0: i32, %arg1: memref<2x8x32xf32, #tpu.memory_space<vmem>>, %arg2: memref<2x8x32xf32, #tpu.memory_space<vmem>>, %arg3: memref<32x128xbf16, #tpu.memory_space<vmem>>, %arg4: memref<1x128xf32, #tpu.memory_space<vmem>>, %arg5: memref<32x128xbf16, #tpu.memory_space<vmem>>, %arg6: memref<1x128xf32, #tpu.memory_space<vmem>>, %arg7: memref<128x32xf32, #tpu.memory_space<vmem>>, %arg8: memref<2x32xf32, #tpu.memory_space<vmem>>) attributes {dimension_semantics = [#tpu.dimension_semantics<parallel>], iteration_bounds = array<i64: 1>, scalar_prefetch = 0 : i64, scratch_operands = 0 : i64, tpu.core_type = #tpu.core_type<tc>, window_params = [{transform_indices = @transform_0, window_bounds = array<i64: 2, 8, 32>}, {transform_indices = @transform_1, window_bounds = array<i64: 2, 8, 32>}, {pipeline_mode = #tpu.pipeline_mode<synchronous>, transform_indices = @transform_2, window_bounds = array<i64: 32, 128>}, {pipeline_mode = #tpu.pipeline_mode<synchronous>, transform_indices = @transform_3, window_bounds = array<i64: 1, 128>}, {pipeline_mode = #tpu.pipeline_mode<synchronous>, transform_indices = @transform_4, window_bounds = array<i64: 32, 128>}, {pipeline_mode = #tpu.pipeline_mode<synchronous>, transform_indices = @transform_5, window_bounds = array<i64: 1, 128>}, {pipeline_mode = #tpu.pipeline_mode<synchronous>, transform_indices = @transform_6, window_bounds = array<i64: 128, 32>}, {transform_indices = @transform_7, window_bounds = array<i64: 2, 32>}]} {
    %c0 = arith.constant 0 : index
    %c0_0 = arith.constant 0 : index
    %c0_1 = arith.constant 0 : index
    %0 = vector.load %arg1[%c0, %c0_0, %c0_1] : memref<2x8x32xf32, #tpu.memory_space<vmem>>, vector<2x1x32xf32>
    %1 = vector.shape_cast %0 : vector<2x1x32xf32> to vector<2x32xf32>
    %2 = arith.truncf %1 : vector<2x32xf32> to vector<2x32xbf16>
    %c0_2 = arith.constant 0 : index
    %c0_3 = arith.constant 0 : index
    %c0_4 = arith.constant 0 : index
    %3 = vector.load %arg2[%c0_2, %c0_3, %c0_4] : memref<2x8x32xf32, #tpu.memory_space<vmem>>, vector<2x1x32xf32>
    %4 = vector.shape_cast %3 : vector<2x1x32xf32> to vector<2x32xf32>
    %5 = arith.truncf %4 : vector<2x32xf32> to vector<2x32xbf16>
    %c0_5 = arith.constant 0 : index
    %c0_6 = arith.constant 0 : index
    %6 = vector.load %arg3[%c0_5, %c0_6] : memref<32x128xbf16, #tpu.memory_space<vmem>>, vector<32x128xbf16>
    %cst = arith.constant dense<0.000000e+00> : vector<2x128xf32>
    %7 = tpu.matmul %2, %6, %cst {dimension_numbers = #tpu.dot_dimension_numbers<[1], [0], [0], [1], [0, 0, 1, 1], [], []>} : vector<2x32xbf16>, vector<32x128xbf16>, vector<2x128xf32> -> vector<2x128xf32>
    %c0_7 = arith.constant 0 : index
    %c0_8 = arith.constant 0 : index
    %8 = vector.load %arg4[%c0_7, %c0_8] : memref<1x128xf32, #tpu.memory_space<vmem>>, vector<1x128xf32>
    %9 = vector.broadcast %8 : vector<1x128xf32> to vector<2x128xf32>
    %10 = arith.addf %7, %9 : vector<2x128xf32>
    %c0_9 = arith.constant 0 : index
    %c0_10 = arith.constant 0 : index
    %11 = vector.load %arg5[%c0_9, %c0_10] : memref<32x128xbf16, #tpu.memory_space<vmem>>, vector<32x128xbf16>
    %cst_11 = arith.constant dense<0.000000e+00> : vector<2x128xf32>
    %12 = tpu.matmul %5, %11, %cst_11 {dimension_numbers = #tpu.dot_dimension_numbers<[1], [0], [0], [1], [0, 0, 1, 1], [], []>} : vector<2x32xbf16>, vector<32x128xbf16>, vector<2x128xf32> -> vector<2x128xf32>
    %c0_12 = arith.constant 0 : index
    %c0_13 = arith.constant 0 : index
    %13 = vector.load %arg6[%c0_12, %c0_13] : memref<1x128xf32, #tpu.memory_space<vmem>>, vector<1x128xf32>
    %14 = vector.broadcast %13 : vector<1x128xf32> to vector<2x128xf32>
    %15 = arith.addf %12, %14 : vector<2x128xf32>
    %16 = arith.mulf %10, %15 : vector<2x128xf32>
    %c0_14 = arith.constant 0 : index
    %c0_15 = arith.constant 0 : index
    %17 = vector.load %arg7[%c0_14, %c0_15] : memref<128x32xf32, #tpu.memory_space<vmem>>, vector<128x32xf32>
    %cst_16 = arith.constant dense<0.000000e+00> : vector<2x32xf32>
    %18 = tpu.matmul %16, %17, %cst_16 {dimension_numbers = #tpu.dot_dimension_numbers<[1], [0], [0], [1], [0, 0, 1, 1], [], []>} : vector<2x128xf32>, vector<128x32xf32>, vector<2x32xf32> -> vector<2x32xf32>
    %19 = math.absf %18 : vector<2x32xf32>
    %20 = math.sqrt %19 : vector<2x32xf32>
    %cst_17 = arith.constant 0.000000e+00 : f32
    %21 = vector.broadcast %cst_17 : f32 to vector<2x32xf32>
    %22 = arith.cmpf oge, %18, %21 : vector<2x32xf32>
    %cst_18 = arith.constant 0.000000e+00 : f32
    %23 = vector.broadcast %cst_18 : f32 to vector<2x32xf32>
    %24 = arith.subf %23, %20 : vector<2x32xf32>
    %25 = arith.select %22, %20, %24 : vector<2x32xi1>, vector<2x32xf32>
    %26 = arith.mulf %25, %25 : vector<2x32xf32>
    %cst_19 = arith.constant dense<0.000000e+00> : vector<2xf32>
    %27 = vector.multi_reduction <add>, %26, %cst_19 [1] : vector<2x32xf32> to vector<2xf32>
    %28 = vector.shape_cast %27 : vector<2xf32> to vector<2x1xf32>
    %cst_20 = arith.constant 1.000000e-24 : f32
    %29 = vector.broadcast %cst_20 : f32 to vector<2x1xf32>
    %30 = arith.addf %28, %29 : vector<2x1xf32>
    %31 = math.rsqrt %30 : vector<2x1xf32>
    %32 = vector.broadcast %31 : vector<2x1xf32> to vector<2x32xf32>
    %33 = arith.mulf %25, %32 : vector<2x32xf32>
    %c0_21 = arith.constant 0 : index
    %c0_22 = arith.constant 0 : index
    %34 = vector.load %arg8[%c0_21, %c0_22] : memref<2x32xf32, #tpu.memory_space<vmem>>, vector<2x32xf32>
    tpu.vector_store %arg8[%c0_21, %c0_22], %33 {strides = array<i32>} : memref<2x32xf32, #tpu.memory_space<vmem>>, vector<2x32xf32>,
    return
  }
  func.func @transform_0(%arg0: i32) -> (i32, i32, i32) {
    %c0_i32 = arith.constant 0 : i32
    %c0_i32_0 = arith.constant 0 : i32
    %c0_i32_1 = arith.constant 0 : i32
    return %arg0, %c0_i32, %c0_i32_0 : i32, i32, i32
  }
  func.func @transform_1(%arg0: i32) -> (i32, i32, i32) {
    %c0_i32 = arith.constant 0 : i32
    %c0_i32_0 = arith.constant 0 : i32
    %c0_i32_1 = arith.constant 0 : i32
    return %arg0, %c0_i32, %c0_i32_0 : i32, i32, i32
  }
  func.func @transform_2(%arg0: i32) -> (i32, i32) {
    %c0_i32 = arith.constant 0 : i32
    %c0_i32_0 = arith.constant 0 : i32
    %c0_i32_1 = arith.constant 0 : i32
    return %c0_i32, %c0_i32_0 : i32, i32
  }
  func.func @transform_3(%arg0: i32) -> (i32, i32) {
    %c0_i32 = arith.constant 0 : i32
    %c0_i32_0 = arith.constant 0 : i32
    %c0_i32_1 = arith.constant 0 : i32
    return %c0_i32, %c0_i32_0 : i32, i32
  }
  func.func @transform_4(%arg0: i32) -> (i32, i32) {
    %c0_i32 = arith.constant 0 : i32
    %c0_i32_0 = arith.constant 0 : i32
    %c0_i32_1 = arith.constant 0 : i32
    return %c0_i32, %c0_i32_0 : i32, i32
  }
  func.func @transform_5(%arg0: i32) -> (i32, i32) {
    %c0_i32 = arith.constant 0 : i32
    %c0_i32_0 = arith.constant 0 : i32
    %c0_i32_1 = arith.constant 0 : i32
    return %c0_i32, %c0_i32_0 : i32, i32
  }
  func.func @transform_6(%arg0: i32) -> (i32, i32) {
    %c0_i32 = arith.constant 0 : i32
    %c0_i32_0 = arith.constant 0 : i32
    %c0_i32_1 = arith.constant 0 : i32
    return %c0_i32, %c0_i32_0 : i32, i32
  }
  func.func @transform_7(%arg0: i32) -> (i32, i32) {
    %c0_i32 = arith.constant 0 : i32
    %c0_i32_0 = arith.constant 0 : i32
    return %arg0, %c0_i32 : i32, i32
  }
}

</mosaic_0001>

<llo_original>
// kernel: tpu_custom_call.1
$region0: #{tpu_custom_call.1}
  #allocation0 [shape = 'u32[]', space=smem, size = 0x4, offset = 0x4, fixed_abs, tag = 'smem constant byte address 0x4 - core index']
  #allocation1 [shape = 'u32[144,128]{1,0:T(1,128)}', space=vmem, size = 0x12000, scoped, tag = 'internal scratch']
  %s0 = inlined_call_operand.vmem [shape: f32[2,8,32], index: 0, kind: input, shape index: {}]
  %s1 = inlined_call_operand.vmem [shape: f32[2,8,32], index: 1, kind: input, shape index: {}]
  %s2 = inlined_call_operand.vmem [shape: bf16[32,128], index: 2, kind: input, shape index: {}]
  %s3 = inlined_call_operand.vmem [shape: f32[1,128], index: 3, kind: input, shape index: {}]
  %s4 = inlined_call_operand.vmem [shape: bf16[32,128], index: 4, kind: input, shape index: {}]
  %s5 = inlined_call_operand.vmem [shape: f32[1,128], index: 5, kind: input, shape index: {}]
  %s6 = inlined_call_operand.vmem [shape: f32[128,32], index: 6, kind: input, shape index: {}]
  %s7 = inlined_call_operand.hbm [shape: f32[2,32], index: 7, kind: output, shape index: {}]
  %s8 = sld [smem:[#allocation0]]
  $region38: #{tpu_custom_call.1} parent=0
    _
  %s10 = ssub.s32 1, %s8
  %s11 = scalar_select 0, %s10, %s8
  $region1: #{tpu_custom_call.1} parent=0
    #allocation2 [shape = 'u8[1024]{0}', space=vmem, size = 0x400, scoped, tag = 'output window, operand 0, single buffered']
    #allocation3 [shape = 's32[1]{0}', space=sflag, size = 0x4, scoped, tag = 'scoped memory for tpu_custom_call.1']
    %12 = vsyncpa [#allocation3], 0
    // Predicated region
    $region2: #{tpu_custom_call.1} parent=1 // pred_check
      _
    $region3: #{tpu_custom_call.1} parent=1 // pred_check_branch
      %14 = sbr.rel (0) target = $region5
    $region4: #{tpu_custom_call.1} parent=1 // pred_region
      _
    $region5: #{tpu_custom_call.1} parent=1 // pred_fallthru
      _
    // Predicated region
    $region6: #{tpu_custom_call.1} parent=1 // pred_check
      _
    $region7: #{tpu_custom_call.1} parent=1 // pred_check_branch
      %16 = sbr.rel (0) target = $region9
    $region8: #{tpu_custom_call.1} parent=1 // pred_region
      _
    $region9: #{tpu_custom_call.1} parent=1 // pred_fallthru
      _
    // Predicated region
    $region10: #{tpu_custom_call.1} parent=1 // pred_check
      _
    $region11: #{tpu_custom_call.1} parent=1 // pred_check_branch
      %18 = sbr.rel (0) target = $region13
    $region12: #{tpu_custom_call.1} parent=1 // pred_region
      _
    $region13: #{tpu_custom_call.1} parent=1 // pred_fallthru
      _
    // Predicated region
    $region14: #{tpu_custom_call.1} parent=1 // pred_check
      _
    $region15: #{tpu_custom_call.1} parent=1 // pred_check_branch
      %20 = sbr.rel (0) target = $region17
    $region16: #{tpu_custom_call.1} parent=1 // pred_region
      _
    $region17: #{tpu_custom_call.1} parent=1 // pred_fallthru
      _
    // Predicated region
    $region18: #{tpu_custom_call.1} parent=1 // pred_check
      _
    $region19: #{tpu_custom_call.1} parent=1 // pred_check_branch
      %22 = sbr.rel (0) target = $region21
    $region20: #{tpu_custom_call.1} parent=1 // pred_region
      _
    $region21: #{tpu_custom_call.1} parent=1 // pred_fallthru
      _
    // Predicated region
    $region22: #{tpu_custom_call.1} parent=1 // pred_check
      _
    $region23: #{tpu_custom_call.1} parent=1 // pred_check_branch
      %24 = sbr.rel (0) target = $region25
    $region24: #{tpu_custom_call.1} parent=1 // pred_region
      _
    $region25: #{tpu_custom_call.1} parent=1 // pred_fallthru
      _
    // Predicated region
    $region26: #{tpu_custom_call.1} parent=1 // pred_check
      _
    $region27: #{tpu_custom_call.1} parent=1 // pred_check_branch
      %26 = sbr.rel (0) target = $region29
    $region28: #{tpu_custom_call.1} parent=1 // pred_region
      _
    $region29: #{tpu_custom_call.1} parent=1 // pred_fallthru
      _
    %v28 = vld [vmem:[%s0] sm:$0x1]
    %v29 = vld [vmem:[%s0 + $0x8] sm:$0x1]
    %v30 = vpack.c.bf16 %v28, %v28
    %v31 = vpack.c.bf16 %v29, %v29
    %v32 = vld [vmem:[%s1] sm:$0x1]
    %v33 = vld [vmem:[%s1 + $0x8] sm:$0x1]
    %v34 = vpack.c.bf16 %v32, %v32
    %v35 = vpack.c.bf16 %v33, %v33
    %v36 = vld [vmem:[%s2] sm:$0xf]
    %v37 = vld [vmem:[%s2 + $0x4] sm:$0xf]
    %v38 = vld [vmem:[%s2 + $0x8] sm:$0xf]
    %v39 = vld [vmem:[%s2 + $0xc] sm:$0xf]
    %v40 = vld [vmem:[%s3] sm:$0x1]
    %v42 = vlaneseq
    %v43 = vshrl.u32 %v42, 7
    %v44 = vsub.s32 0, %v43
    %v45 = vrot.slane %v40, %v44
    %v49 = vunpack.c.l.b16 %v30
    %v50 = vunpack.c.l.b16 %v31
    %v51 = vrot.slane %v50, 7
    %vm52 = vcmask 1041409
    %v53 = vsel %vm52, %v51, %v49
    %v54 = vpack.c.b16 %v53, %v53
    %v59 = vunpack.c.l.b16 %v36
    %v60 = vunpack.c.l.b16 %v37
    %v61 = vunpack.c.l.b16 %v38
    %v62 = vunpack.c.l.b16 %v39
    %v63 = vpack.c.b16 %v60, %v59
    %v64 = vpack.c.b16 %v62, %v61
    %vm67 = vcmask 261120
    %v69 = vsel %vm67, %v54, 0
    %71 = vmatprep.subr.bf16.mxu0 0
    %72 = vmatpush1.bf16.msra.mxu0 %v63
    %73 = vmatprep.subr.bf16.mxu0 0
    %74 = vmatpush1.bf16.msra.mxu0 %v64
    %75 = vmatprep.subr.bf16.mxu0 0
    %76 = vmatpush1.bf16.msra.mxu0 0
    %77 = vmatprep.subr.bf16.mxu0 0
    %78 = vmatpush1.bf16.msra.mxu0 0
    %79 = vmatprep.subr.bf16.mxu0 0
    %80 = vmatpush1.bf16.msra.mxu0 0
    %81 = vmatprep.subr.bf16.mxu0 0
    %82 = vmatpush1.bf16.msra.mxu0 0
    %83 = vmatprep.subr.bf16.mxu0 0
    %84 = vmatpush1.bf16.msra.mxu0 0
    %85 = vmatprep.subr.bf16.mxu0 0
    %86 = vmatpush1.bf16.msra.mxu0 0
    %87 = vmatprep.subr.bf16.mxu0 0
    %88 = vmatpush1.bf16.msra.mxu0 0
    %89 = vmatprep.subr.bf16.mxu0 0
    %90 = vmatpush1.bf16.msra.mxu0 0
    %91 = vmatprep.subr.bf16.mxu0 0
    %92 = vmatpush1.bf16.msra.mxu0 0
    %93 = vmatprep.subr.bf16.mxu0 0
    %94 = vmatpush1.bf16.msra.mxu0 0
    %95 = vmatprep.subr.bf16.mxu0 0
    %96 = vmatpush1.bf16.msra.mxu0 0
    %97 = vmatprep.subr.bf16.mxu0 0
    %98 = vmatpush1.bf16.msra.mxu0 0
    %99 = vmatprep.subr.bf16.mxu0 0
    %100 = vmatpush1.bf16.msra.mxu0 0
    %101 = vmatprep.subr.bf16.mxu0 0
    %102 = vmatpush1.bf16.msra.mxu0 0
    %103 = vmatprep.mubr.bf16.mxu0 0
    %104 = vmatmul.mubr.bf16.gmra.mrb[0].mxu0 %v69
    %v105 = vpop.f32.mrb[0].mxu0
    %v106 = vadd.f32 %v45, %v105
    %v107 = vpop.f32.mrb[0].mxu0
    %v108 = vpop.f32.mrb[0].mxu0
    %v109 = vpop.f32.mrb[0].mxu0
    %110 = vdwg.mxu0
    %v111 = vld [vmem:[%s4] sm:$0xf]
    %v112 = vld [vmem:[%s4 + $0x4] sm:$0xf]
    %v113 = vld [vmem:[%s4 + $0x8] sm:$0xf]
    %v114 = vld [vmem:[%s4 + $0xc] sm:$0xf]
    %v115 = vld [vmem:[%s5] sm:$0x1]
    %v117 = vlaneseq
    %v118 = vshrl.u32 %v117, 7
    %v119 = vsub.s32 0, %v118
    %v120 = vrot.slane %v115, %v119
    %v124 = vunpack.c.l.b16 %v34
    %v125 = vunpack.c.l.b16 %v35
    %v126 = vrot.slane %v125, 7
    %v127 = vsel %vm52, %v126, %v124
    %v128 = vpack.c.b16 %v127, %v127
    %v133 = vunpack.c.l.b16 %v111
    %v134 = vunpack.c.l.b16 %v112
    %v135 = vunpack.c.l.b16 %v113
    %v136 = vunpack.c.l.b16 %v114
    %v137 = vpack.c.b16 %v134, %v133
    %v138 = vpack.c.b16 %v136, %v135
    %v142 = vsel %vm67, %v128, 0
    %144 = vmatprep.subr.bf16.mxu0 0
    %145 = vmatpush1.bf16.msra.mxu0 %v137
    %146 = vmatprep.subr.bf16.mxu0 0
    %147 = vmatpush1.bf16.msra.mxu0 %v138
    %148 = vmatprep.subr.bf16.mxu0 0
    %149 = vmatpush1.bf16.msra.mxu0 0
    %150 = vmatprep.subr.bf16.mxu0 0
    %151 = vmatpush1.bf16.msra.mxu0 0
    %152 = vmatprep.subr.bf16.mxu0 0
    %153 = vmatpush1.bf16.msra.mxu0 0
    %154 = vmatprep.subr.bf16.mxu0 0
    %155 = vmatpush1.bf16.msra.mxu0 0
    %156 = vmatprep.subr.bf16.mxu0 0
    %157 = vmatpush1.bf16.msra.mxu0 0
    %158 = vmatprep.subr.bf16.mxu0 0
    %159 = vmatpush1.bf16.msra.mxu0 0
    %160 = vmatprep.subr.bf16.mxu0 0
    %161 = vmatpush1.bf16.msra.mxu0 0
    %162 = vmatprep.subr.bf16.mxu0 0
    %163 = vmatpush1.bf16.msra.mxu0 0
    %164 = vmatprep.subr.bf16.mxu0 0
    %165 = vmatpush1.bf16.msra.mxu0 0
    %166 = vmatprep.subr.bf16.mxu0 0
    %167 = vmatpush1.bf16.msra.mxu0 0
    %168 = vmatprep.subr.bf16.mxu0 0
    %169 = vmatpush1.bf16.msra.mxu0 0
    %170 = vmatprep.subr.bf16.mxu0 0
    %171 = vmatpush1.bf16.msra.mxu0 0
    %172 = vmatprep.subr.bf16.mxu0 0
    %173 = vmatpush1.bf16.msra.mxu0 0
    %174 = vmatprep.subr.bf16.mxu0 0
    %175 = vmatpush1.bf16.msra.mxu0 0
    %176 = vmatprep.mubr.bf16.mxu0 0
    %177 = vmatmul.mubr.bf16.gmra.mrb[0].mxu0 %v142
    %v178 = vpop.f32.mrb[0].mxu0
    %v179 = vadd.f32 %v120, %v178
    %v180 = vpop.f32.mrb[0].mxu0
    %v181 = vpop.f32.mrb[0].mxu0
    %v182 = vpop.f32.mrb[0].mxu0
    %183 = vdwg.mxu0
    %v184 = vmul.f32 %v106, %v179
    %v185 = vld [vmem:[%s6] sm:$0xff]
    %v186 = vld [vmem:[%s6 + $0x8] sm:$0xff]
    %v187 = vld [vmem:[%s6 + $0x10] sm:$0xff]
    %v188 = vld [vmem:[%s6 + $0x18] sm:$0xff]
    %v189 = vld [vmem:[%s6 + $0x20] sm:$0xff]
    %v190 = vld [vmem:[%s6 + $0x28] sm:$0xff]
    %v191 = vld [vmem:[%s6 + $0x30] sm:$0xff]
    %v192 = vld [vmem:[%s6 + $0x38] sm:$0xff]
    %v193 = vld [vmem:[%s6 + $0x40] sm:$0xff]
    %v194 = vld [vmem:[%s6 + $0x48] sm:$0xff]
    %v195 = vld [vmem:[%s6 + $0x50] sm:$0xff]
    %v196 = vld [vmem:[%s6 + $0x58] sm:$0xff]
    %v197 = vld [vmem:[%s6 + $0x60] sm:$0xff]
    %v198 = vld [vmem:[%s6 + $0x68] sm:$0xff]
    %v199 = vld [vmem:[%s6 + $0x70] sm:$0xff]
    %v200 = vld [vmem:[%s6 + $0x78] sm:$0xff]
    %201 = vmatprep.subr.mxu0 0.0
    %202 = vmatpush1.msra.mxu0 %v185
    %203 = vmatprep.subr.mxu0 0.0
    %204 = vmatpush1.msra.mxu0 %v186
    %205 = vmatprep.subr.mxu0 0.0
    %206 = vmatpush1.msra.mxu0 %v187
    %207 = vmatprep.subr.mxu0 0.0
    %208 = vmatpush1.msra.mxu0 %v188
    %209 = vmatprep.subr.mxu0 0.0
    %210 = vmatpush1.msra.mxu0 %v189
    %211 = vmatprep.subr.mxu0 0.0
    %212 = vmatpush1.msra.mxu0 %v190
    %213 = vmatprep.subr.mxu0 0.0
    %214 = vmatpush1.msra.mxu0 %v191
    %215 = vmatprep.subr.mxu0 0.0
    %216 = vmatpush1.msra.mxu0 %v192
    %217 = vmatprep.subr.mxu0 0.0
    %218 = vmatpush1.msra.mxu0 %v193
    %219 = vmatprep.subr.mxu0 0.0
    %220 = vmatpush1.msra.mxu0 %v194
    %221 = vmatprep.subr.mxu0 0.0
    %222 = vmatpush1.msra.mxu0 %v195
    %223 = vmatprep.subr.mxu0 0.0
    %224 = vmatpush1.msra.mxu0 %v196
    %225 = vmatprep.subr.mxu0 0.0
    %226 = vmatpush1.msra.mxu0 %v197
    %227 = vmatprep.subr.mxu0 0.0
    %228 = vmatpush1.msra.mxu0 %v198
    %229 = vmatprep.subr.mxu0 0.0
    %230 = vmatpush1.msra.mxu0 %v199
    %231 = vmatprep.subr.mxu0 0.0
    %232 = vmatpush1.msra.mxu0 %v200
    %233 = vmatprep.subr.mxu0 0.0
    %234 = vmatpush1.msra.mxu0 0.0
    %235 = vmatprep.subr.mxu0 0.0
    %236 = vmatpush1.msra.mxu0 0.0
    %237 = vmatprep.subr.mxu0 0.0
    %238 = vmatpush1.msra.mxu0 0.0
    %239 = vmatprep.subr.mxu0 0.0
    %240 = vmatpush1.msra.mxu0 0.0
    %241 = vmatprep.subr.mxu0 0.0
    %242 = vmatpush1.msra.mxu0 0.0
    %243 = vmatprep.subr.mxu0 0.0
    %244 = vmatpush1.msra.mxu0 0.0
    %245 = vmatprep.subr.mxu0 0.0
    %246 = vmatpush1.msra.mxu0 0.0
    %247 = vmatprep.subr.mxu0 0.0
    %248 = vmatpush1.msra.mxu0 0.0
    %249 = vmatprep.subr.mxu0 0.0
    %250 = vmatpush1.msra.mxu0 0.0
    %251 = vmatprep.subr.mxu0 0.0
    %252 = vmatpush1.msra.mxu0 0.0
    %253 = vmatprep.subr.mxu0 0.0
    %254 = vmatpush1.msra.mxu0 0.0
    %255 = vmatprep.subr.mxu0 0.0
    %256 = vmatpush1.msra.mxu0 0.0
    %257 = vmatprep.subr.mxu0 0.0
    %258 = vmatpush1.msra.mxu0 0.0
    %259 = vmatprep.subr.mxu0 0.0
    %260 = vmatpush1.msra.mxu0 0.0
    %261 = vmatprep.subr.mxu0 0.0
    %262 = vmatpush1.msra.mxu0 0.0
    %263 = vmatprep.subr.mxu0 0.0
    %264 = vmatpush1.msra.mxu0 0.0
    %265 = vmatprep.mubr.f32.mxu0 0.0
    %266 = vmatmul.mubr.f32.gmra.mrb[0].mxu0 %v184
    %v267 = vpop.f32.mrb[0].mxu0
    %v268 = vadd.f32 0.0, %v267
    %v269 = vpop.f32.mrb[0].mxu0
    %270 = vdwg.mxu0
    %v271 = vand.u32 2147483647, %v268
    %v272 = vrsqrt.pop %v271
    %v273 = vmul.f32 %v271, %v272
    %vm274 = vcmp.eq.f32.partialorder %v271, inf
    %v275 = vsel %vm274, %v271, %v273
    %vm276 = vcmp.eq.f32.partialorder %v271, 0.0
    %v277 = vand.u32 %v271, 2147483648
    %v278 = vsel %vm276, %v277, %v275
    %vm279 = vcmp.ge.f32.partialorder %v268, 0.0
    %v280 = vsub.f32 0.0, %v278
    %v281 = vsel %vm279, %v278, %v280
    %v282 = vmul.f32 %v281, %v281
    %vm283 = vcmask 254976
    %v284 = vsel %vm283, %v282, 0.0
    %285 = vadd.xlane.f32.xlu0 %v284
    %v286 = vpop.xlane.xlu0 %285
    %v287 = vadd.f32 %v286, 1e-24
    %v288 = vrsqrt.pop %v287
    %v289 = vmul.f32 %v281, %v288
    %290 = vst.msk [vmem:[#allocation2] sm:$0x3] %vm283, %v289
    // Predicated region
    $region30: #{tpu_custom_call.1} parent=1 // pred_check
      _
    $region31: #{tpu_custom_call.1} parent=1 // pred_check_branch
      %292 = sbr.rel (0) target = $region33
    $region32: #{tpu_custom_call.1} parent=1 // pred_region
      %s294 = ssub.s32 32, 32
      %295 = vsyncadd [#allocation3], %s294
      %s297 = sshll.u32 [#allocation2], 4
      %s298 = int_to_ptr.vmem [resolvable:$true] %s297
      %300 = dma.vmem_to_hbm [thread:$0]  %s298, 32, %s7, [#allocation3]
    $region33: #{tpu_custom_call.1} parent=1 // pred_fallthru
      _
    // Predicated region
    $region34: #{tpu_custom_call.1} parent=1 // pred_check
      _
    $region35: #{tpu_custom_call.1} parent=1 // pred_check_branch
      %302 = sbr.rel (0) target = $region37
    $region36: #{tpu_custom_call.1} parent=1 // pred_region
      %303 = dma.done [#allocation3], 32
    $region37: #{tpu_custom_call.1} parent=1 // pred_fallthru
      _
    %304 = vsyncpa [#allocation3], 1

</llo_original>
